<compile_context>
chip_gen: v6e
topology: v6e:2x2x1
jax: 0.10.0
libtpu: 0.0.40
codegen_flags: <defaults>
</compile_context>

<pallas_src>
import math
import jax
import jax.numpy as jnp
from jax import lax
from jax.experimental import pallas as pl
from jax.experimental.pallas import tpu as pltpu

# ----------------------------- config -----------------------------
B = 2          # batch
S = 8          # sequence length
D = 32         # d_model
H = 4          # num_heads
DK = D // H    # d_k
F = 64         # d_ff
EPS = 1e-5     # PyTorch LayerNorm default eps
BS = B * S     # flattened rows
NEG = -1e9     # masked-fill value (matches the PyTorch module)


# ----------------------------- kernel -----------------------------
def encoder_layer_kernel(
    x_ref, bias_ref, hmask_ref,
    wq_ref, bq_ref, wk_ref, bk_ref, wv_ref, bv_ref, wo_ref, bo_ref,
    g1_ref, be1_ref, w1_ref, b1_ref, w2_ref, b2_ref, g2_ref, be2_ref,
    o_ref,
):
    x = x_ref[...]                                   # (BS, D) f32
    hmask = hmask_ref[...]                           # (H*BS, D) per-head column mask

    # ---- Q/K/V projections (1/sqrt(d_k) folded into wq/bq in the wrapper) ----
    q = jnp.dot(x, wq_ref[...], preferred_element_type=jnp.float32) + bq_ref[...]
    k = jnp.dot(x, wk_ref[...], preferred_element_type=jnp.float32) + bk_ref[...]
    v = jnp.dot(x, wv_ref[...], preferred_element_type=jnp.float32) + bv_ref[...]

    # ---- one K transpose, hoisted (single XLU transpose for all heads) ----
    kT = k.T                                         # (D, BS)

    # ---- all heads in one matmul: tile Q along sublanes, mask per-head cols ----
    # q_stack block h keeps only columns [h*DK, (h+1)*DK); the masked columns
    # contribute zero to the contraction, so block h of the product is Q_h@K_h^T.
    q_stack = jnp.concatenate([q] * H, axis=0) * hmask        # (H*BS, D)
    scores = jnp.dot(q_stack, kT,
                     preferred_element_type=jnp.float32) + bias_ref[...]  # (H*BS, BS)

    # ---- single fused softmax over all head/batch tiles (exact division) ----
    m = jnp.max(scores, axis=-1, keepdims=True)
    e = jnp.exp(scores - m)          # masked / cross-batch entries underflow to 0
    probs = e / jnp.sum(e, axis=-1, keepdims=True)

    # ---- attention * V in one matmul, then head recombination ----
    ow = jnp.dot(probs, v, preferred_element_type=jnp.float32)   # (H*BS, D)
    owm = ow * hmask                 # keep head h's columns in row-block h
    attn_pre = owm[0:BS, :]
    for h in range(1, H):            # sublane slices (16-row granularity): free
        attn_pre = attn_pre + owm[h * BS:(h + 1) * BS, :]        # (BS, D)

    # ---- single merged output projection ----
    attn = jnp.dot(attn_pre, wo_ref[...],
                   preferred_element_type=jnp.float32) + bo_ref[...]

    # ---- residual + LayerNorm 1 (dropout = identity in eval) ----
    x1 = x + attn
    mu1 = jnp.mean(x1, axis=-1, keepdims=True)
    var1 = jnp.mean((x1 - mu1) ** 2, axis=-1, keepdims=True)
    x1n = (x1 - mu1) * lax.rsqrt(var1 + EPS) * g1_ref[...] + be1_ref[...]

    # ---- position-wise feed-forward ----
    hdn = jnp.dot(x1n, w1_ref[...], preferred_element_type=jnp.float32) + b1_ref[...]
    hdn = jnp.maximum(hdn, 0.0)
    ff = jnp.dot(hdn, w2_ref[...], preferred_element_type=jnp.float32) + b2_ref[...]

    # ---- residual + LayerNorm 2 ----
    x2 = x1n + ff
    mu2 = jnp.mean(x2, axis=-1, keepdims=True)
    var2 = jnp.mean((x2 - mu2) ** 2, axis=-1, keepdims=True)
    out = (x2 - mu2) * lax.rsqrt(var2 + EPS) * g2_ref[...] + be2_ref[...]

    o_ref[...] = out.astype(o_ref.dtype)


# ----------------------------- one-time prep (outside hot path) -----------------------------
def prepare_inputs(params, mask):
    """Fold scales / build mask bias and head mask ONCE (not per call)."""
    (wq, bq, wk, bk, wv, bv, wo, bo, g1, be1, w1, b1, w2, b2, g2, be2) = params

    scale = 1.0 / math.sqrt(DK)
    wq_s, bq_s = wq * scale, bq * scale

    # Block-diagonal additive mask bias over the flattened batch:
    # cross-batch entries and user-masked (mask==0) entries get -1e9, else 0.
    maskf = mask[:, 0].astype(jnp.float32)                       # (B, S, S)
    eye = jnp.eye(B, dtype=jnp.float32)[:, :, None, None]        # (B, B, 1, 1)
    allowed = (eye * maskf[:, None]).transpose(0, 2, 1, 3).reshape(BS, BS)
    bias = jnp.where(allowed != 0.0, 0.0, NEG).astype(jnp.float32)   # (BS, BS)
    bias_stack = jnp.tile(bias, (H, 1))                          # (H*BS, BS)

    # Per-head column selection mask, stacked along sublanes: row-block h keeps
    # columns [h*DK, (h+1)*DK).
    hm = (jnp.arange(D)[None, :] // DK == jnp.arange(H)[:, None]).astype(jnp.float32)
    head_mask = jnp.repeat(hm, BS, axis=0)                       # (H*BS, D)

    return (bias_stack, head_mask, wq_s, bq_s, wk, bk, wv, bv,
            wo, bo, g1, be1, w1, b1, w2, b2, g2, be2)


# ----------------------------- per-call wrapper (jitted) -----------------------------
@jax.jit
def encoder_layer(x, prepped):
    xf = x.reshape(BS, D)
    n_in = 1 + len(prepped)
    out = pl.pallas_call(
        encoder_layer_kernel,
        out_shape=jax.ShapeDtypeStruct((BS, D), x.dtype),
        in_specs=[pl.BlockSpec(memory_space=pltpu.MemorySpace.VMEM)] * n_in,
        out_specs=pl.BlockSpec(memory_space=pltpu.MemorySpace.VMEM),
    )(xf, *prepped)
    return out.reshape(B, S, D)


# ----------------------------- reference (pure JAX) -----------------------------
def encoder_layer_ref(x, mask, params):
    (wq, bq, wk, bk, wv, bv, wo, bo, g1, be1, w1, b1, w2, b2, g2, be2) = params
    q = x @ wq + bq[0]
    k = x @ wk + bk[0]
    v = x @ wv + bv[0]

    def split(t):  # (B,S,D) -> (B,H,S,DK)
        return t.reshape(B, S, H, DK).transpose(0, 2, 1, 3)

    qh, kh, vh = split(q), split(k), split(v)
    scores = jnp.einsum("bhqd,bhkd->bhqk", qh, kh) / math.sqrt(DK)
    scores = jnp.where(mask == 0, NEG, scores)
    probs = jax.nn.softmax(scores, axis=-1)
    attn = jnp.einsum("bhqk,bhkd->bhqd", probs, vh)
    attn = attn.transpose(0, 2, 1, 3).reshape(B, S, D) @ wo + bo[0]

    def ln(t, g, b):
        mu = jnp.mean(t, axis=-1, keepdims=True)
        var = jnp.mean((t - mu) ** 2, axis=-1, keepdims=True)
        return (t - mu) / jnp.sqrt(var + EPS) * g[0] + b[0]

    x1 = ln(x + attn, g1, be1)
    ff = jnp.maximum(x1 @ w1 + b1[0], 0.0) @ w2 + b2[0]
    return ln(x1 + ff, g2, be2)


# ----------------------------- main -----------------------------
if __name__ == "__main__":
    key = jax.random.PRNGKey(0)
    ks = jax.random.split(key, 8)

    def lin(k, din, dout, sc=0.05):
        kw, kb = jax.random.split(k)
        w = jax.random.normal(kw, (din, dout), jnp.float32) * sc
        b = jax.random.normal(kb, (1, dout), jnp.float32) * sc
        return w, b

    wq, bq = lin(ks[0], D, D)
    wk, bk = lin(ks[1], D, D)
    wv, bv = lin(ks[2], D, D)
    wo, bo = lin(ks[3], D, D)
    w1, b1 = lin(ks[4], D, F)
    w2, b2 = lin(ks[5], F, D)
    g1 = jnp.ones((1, D), jnp.float32)
    be1 = jnp.zeros((1, D), jnp.float32)
    g2 = jnp.ones((1, D), jnp.float32)
    be2 = jnp.zeros((1, D), jnp.float32)

    params = (wq, bq, wk, bk, wv, bv, wo, bo, g1, be1, w1, b1, w2, b2, g2, be2)

    x = jax.random.normal(ks[6], (B, S, D), jnp.float32)
    # mask: block out the last 2 key positions for batch 1, keep all for batch 0
    mask = jnp.ones((B, 1, S, S), jnp.float32)
    mask = mask.at[1, :, :, S - 2:].set(0.0)

    prepped = prepare_inputs(params, mask)       # one-time prep, hoisted out of the call path

    out = encoder_layer(x, prepped)
    out = jax.block_until_ready(out)

    ref = encoder_layer_ref(x, mask, params)
    assert out.shape == (B, S, D)
    assert jnp.allclose(out, ref, atol=1e-4, rtol=1e-4), "mismatch vs reference"

    # Note: if a query row were fully masked within its batch, the reference
    # spreads probability over that batch's keys while the block-diagonal bias
    # would spread it over all B*S keys (garbage-in case, not hit here).
    # TODO(synk): dropout is treated as identity (inference mode); training-mode
    # stochastic dropout would need pltpu.prng_* inside the kernel.
    print("KERNEL_OK")
</pallas_src>

<mosaic_0001>
module attributes {stable_mosaic.version = 11 : i64} {
  func.func @encoder_layer_kernel(%arg0: memref<16x32xf32, #tpu.memory_space<vmem>>, %arg1: memref<64x16xf32, #tpu.memory_space<vmem>>, %arg2: memref<64x32xf32, #tpu.memory_space<vmem>>, %arg3: memref<32x32xf32, #tpu.memory_space<vmem>>, %arg4: memref<1x32xf32, #tpu.memory_space<vmem>>, %arg5: memref<32x32xf32, #tpu.memory_space<vmem>>, %arg6: memref<1x32xf32, #tpu.memory_space<vmem>>, %arg7: memref<32x32xf32, #tpu.memory_space<vmem>>, %arg8: memref<1x32xf32, #tpu.memory_space<vmem>>, %arg9: memref<32x32xf32, #tpu.memory_space<vmem>>, %arg10: memref<1x32xf32, #tpu.memory_space<vmem>>, %arg11: memref<1x32xf32, #tpu.memory_space<vmem>>, %arg12: memref<1x32xf32, #tpu.memory_space<vmem>>, %arg13: memref<32x64xf32, #tpu.memory_space<vmem>>, %arg14: memref<1x64xf32, #tpu.memory_space<vmem>>, %arg15: memref<64x32xf32, #tpu.memory_space<vmem>>, %arg16: memref<1x32xf32, #tpu.memory_space<vmem>>, %arg17: memref<1x32xf32, #tpu.memory_space<vmem>>, %arg18: memref<1x32xf32, #tpu.memory_space<vmem>>, %arg19: memref<16x32xf32, #tpu.memory_space<vmem>>) attributes {dimension_semantics = [], scalar_prefetch = 0 : i64, scratch_operands = 0 : i64, tpu.core_type = #tpu.core_type<tc>} {
    %c0 = arith.constant 0 : index
    %c0_0 = arith.constant 0 : index
    %0 = vector.load %arg0[%c0, %c0_0] : memref<16x32xf32, #tpu.memory_space<vmem>>, vector<16x32xf32>
    %c0_1 = arith.constant 0 : index
    %c0_2 = arith.constant 0 : index
    %1 = vector.load %arg2[%c0_1, %c0_2] : memref<64x32xf32, #tpu.memory_space<vmem>>, vector<64x32xf32>
    %c0_3 = arith.constant 0 : index
    %c0_4 = arith.constant 0 : index
    %2 = vector.load %arg3[%c0_3, %c0_4] : memref<32x32xf32, #tpu.memory_space<vmem>>, vector<32x32xf32>
    %cst = arith.constant dense<0.000000e+00> : vector<16x32xf32>
    %3 = tpu.matmul %0, %2, %cst {dimension_numbers = #tpu.dot_dimension_numbers<[1], [0], [0], [1], [0, 0, 1, 1], [], []>} : vector<16x32xf32>, vector<32x32xf32>, vector<16x32xf32> -> vector<16x32xf32>
    %c0_5 = arith.constant 0 : index
    %c0_6 = arith.constant 0 : index
    %4 = vector.load %arg4[%c0_5, %c0_6] : memref<1x32xf32, #tpu.memory_space<vmem>>, vector<1x32xf32>
    %5 = vector.broadcast %4 : vector<1x32xf32> to vector<16x32xf32>
    %6 = arith.addf %3, %5 : vector<16x32xf32>
    %c0_7 = arith.constant 0 : index
    %c0_8 = arith.constant 0 : index
    %7 = vector.load %arg5[%c0_7, %c0_8] : memref<32x32xf32, #tpu.memory_space<vmem>>, vector<32x32xf32>
    %cst_9 = arith.constant dense<0.000000e+00> : vector<16x32xf32>
    %8 = tpu.matmul %0, %7, %cst_9 {dimension_numbers = #tpu.dot_dimension_numbers<[1], [0], [0], [1], [0, 0, 1, 1], [], []>} : vector<16x32xf32>, vector<32x32xf32>, vector<16x32xf32> -> vector<16x32xf32>
    %c0_10 = arith.constant 0 : index
    %c0_11 = arith.constant 0 : index
    %9 = vector.load %arg6[%c0_10, %c0_11] : memref<1x32xf32, #tpu.memory_space<vmem>>, vector<1x32xf32>
    %10 = vector.broadcast %9 : vector<1x32xf32> to vector<16x32xf32>
    %11 = arith.addf %8, %10 : vector<16x32xf32>
    %c0_12 = arith.constant 0 : index
    %c0_13 = arith.constant 0 : index
    %12 = vector.load %arg7[%c0_12, %c0_13] : memref<32x32xf32, #tpu.memory_space<vmem>>, vector<32x32xf32>
    %cst_14 = arith.constant dense<0.000000e+00> : vector<16x32xf32>
    %13 = tpu.matmul %0, %12, %cst_14 {dimension_numbers = #tpu.dot_dimension_numbers<[1], [0], [0], [1], [0, 0, 1, 1], [], []>} : vector<16x32xf32>, vector<32x32xf32>, vector<16x32xf32> -> vector<16x32xf32>
    %c0_15 = arith.constant 0 : index
    %c0_16 = arith.constant 0 : index
    %14 = vector.load %arg8[%c0_15, %c0_16] : memref<1x32xf32, #tpu.memory_space<vmem>>, vector<1x32xf32>
    %15 = vector.broadcast %14 : vector<1x32xf32> to vector<16x32xf32>
    %16 = arith.addf %13, %15 : vector<16x32xf32>
    %17 = tpu.transpose %11, [1, 0] : vector<16x32xf32> -> vector<32x16xf32>
    %18 = tpu.concatenate %6, %6, %6, %6 in 0 : vector<16x32xf32>, vector<16x32xf32>, vector<16x32xf32>, vector<16x32xf32> -> vector<64x32xf32>
    %19 = arith.mulf %18, %1 : vector<64x32xf32>
    %cst_17 = arith.constant dense<0.000000e+00> : vector<64x16xf32>
    %20 = tpu.matmul %19, %17, %cst_17 {dimension_numbers = #tpu.dot_dimension_numbers<[1], [0], [0], [1], [0, 0, 1, 1], [], []>} : vector<64x32xf32>, vector<32x16xf32>, vector<64x16xf32> -> vector<64x16xf32>
    %c0_18 = arith.constant 0 : index
    %c0_19 = arith.constant 0 : index
    %21 = vector.load %arg1[%c0_18, %c0_19] : memref<64x16xf32, #tpu.memory_space<vmem>>, vector<64x16xf32>
    %22 = arith.addf %20, %21 : vector<64x16xf32>
    %cst_20 = arith.constant dense<0xFF800000> : vector<64xf32>
    %23 = vector.multi_reduction <maximumf>, %22, %cst_20 [1] : vector<64x16xf32> to vector<64xf32>
    %24 = vector.shape_cast %23 : vector<64xf32> to vector<64x1xf32>
    %25 = vector.broadcast %24 : vector<64x1xf32> to vector<64x16xf32>
    %26 = arith.subf %22, %25 : vector<64x16xf32>
    %27 = math.exp %26 : vector<64x16xf32>
    %cst_21 = arith.constant dense<0.000000e+00> : vector<64xf32>
    %28 = vector.multi_reduction <add>, %27, %cst_21 [1] : vector<64x16xf32> to vector<64xf32>
    %29 = vector.shape_cast %28 : vector<64xf32> to vector<64x1xf32>
    %30 = vector.broadcast %29 : vector<64x1xf32> to vector<64x16xf32>
    %31 = arith.divf %27, %30 : vector<64x16xf32>
    %cst_22 = arith.constant dense<0.000000e+00> : vector<64x32xf32>
    %32 = tpu.matmul %31, %16, %cst_22 {dimension_numbers = #tpu.dot_dimension_numbers<[1], [0], [0], [1], [0, 0, 1, 1], [], []>} : vector<64x16xf32>, vector<16x32xf32>, vector<64x32xf32> -> vector<64x32xf32>
    %33 = arith.mulf %32, %1 : vector<64x32xf32>
    %34 = vector.extract_strided_slice %33 {offsets = [0, 0], sizes = [16, 32], strides = [1, 1]} : vector<64x32xf32> to vector<16x32xf32>
    %35 = vector.extract_strided_slice %33 {offsets = [16, 0], sizes = [16, 32], strides = [1, 1]} : vector<64x32xf32> to vector<16x32xf32>
    %36 = arith.addf %34, %35 : vector<16x32xf32>
    %37 = vector.extract_strided_slice %33 {offsets = [32, 0], sizes = [16, 32], strides = [1, 1]} : vector<64x32xf32> to vector<16x32xf32>
    %38 = arith.addf %36, %37 : vector<16x32xf32>
    %39 = vector.extract_strided_slice %33 {offsets = [48, 0], sizes = [16, 32], strides = [1, 1]} : vector<64x32xf32> to vector<16x32xf32>
    %40 = arith.addf %38, %39 : vector<16x32xf32>
    %c0_23 = arith.constant 0 : index
    %c0_24 = arith.constant 0 : index
    %41 = vector.load %arg9[%c0_23, %c0_24] : memref<32x32xf32, #tpu.memory_space<vmem>>, vector<32x32xf32>
    %cst_25 = arith.constant dense<0.000000e+00> : vector<16x32xf32>
    %42 = tpu.matmul %40, %41, %cst_25 {dimension_numbers = #tpu.dot_dimension_numbers<[1], [0], [0], [1], [0, 0, 1, 1], [], []>} : vector<16x32xf32>, vector<32x32xf32>, vector<16x32xf32> -> vector<16x32xf32>
    %c0_26 = arith.constant 0 : index
    %c0_27 = arith.constant 0 : index
    %43 = vector.load %arg10[%c0_26, %c0_27] : memref<1x32xf32, #tpu.memory_space<vmem>>, vector<1x32xf32>
    %44 = vector.broadcast %43 : vector<1x32xf32> to vector<16x32xf32>
    %45 = arith.addf %42, %44 : vector<16x32xf32>
    %46 = arith.addf %0, %45 : vector<16x32xf32>
    %cst_28 = arith.constant dense<0.000000e+00> : vector<16xf32>
    %47 = vector.multi_reduction <add>, %46, %cst_28 [1] : vector<16x32xf32> to vector<16xf32>
    %48 = vector.shape_cast %47 : vector<16xf32> to vector<16x1xf32>
    %cst_29 = arith.constant 3.200000e+01 : f32
    %49 = vector.broadcast %cst_29 : f32 to vector<16x1xf32>
    %50 = arith.divf %48, %49 : vector<16x1xf32>
    %51 = vector.broadcast %50 : vector<16x1xf32> to vector<16x32xf32>
    %52 = arith.subf %46, %51 : vector<16x32xf32>
    %53 = arith.mulf %52, %52 : vector<16x32xf32>
    %cst_30 = arith.constant dense<0.000000e+00> : vector<16xf32>
    %54 = vector.multi_reduction <add>, %53, %cst_30 [1] : vector<16x32xf32> to vector<16xf32>
    %55 = vector.shape_cast %54 : vector<16xf32> to vector<16x1xf32>
    %cst_31 = arith.constant 3.200000e+01 : f32
    %56 = vector.broadcast %cst_31 : f32 to vector<16x1xf32>
    %57 = arith.divf %55, %56 : vector<16x1xf32>
    %58 = vector.broadcast %50 : vector<16x1xf32> to vector<16x32xf32>
    %59 = arith.subf %46, %58 : vector<16x32xf32>
    %cst_32 = arith.constant 9.99999974E-6 : f32
    %60 = vector.broadcast %cst_32 : f32 to vector<16x1xf32>
    %61 = arith.addf %57, %60 : vector<16x1xf32>
    %62 = math.rsqrt %61 : vector<16x1xf32>
    %63 = vector.broadcast %62 : vector<16x1xf32> to vector<16x32xf32>
    %64 = arith.mulf %59, %63 : vector<16x32xf32>
    %c0_33 = arith.constant 0 : index
    %c0_34 = arith.constant 0 : index
    %65 = vector.load %arg11[%c0_33, %c0_34] : memref<1x32xf32, #tpu.memory_space<vmem>>, vector<1x32xf32>
    %66 = vector.broadcast %65 : vector<1x32xf32> to vector<16x32xf32>
    %67 = arith.mulf %64, %66 : vector<16x32xf32>
    %c0_35 = arith.constant 0 : index
    %c0_36 = arith.constant 0 : index
    %68 = vector.load %arg12[%c0_35, %c0_36] : memref<1x32xf32, #tpu.memory_space<vmem>>, vector<1x32xf32>
    %69 = vector.broadcast %68 : vector<1x32xf32> to vector<16x32xf32>
    %70 = arith.addf %67, %69 : vector<16x32xf32>
    %c0_37 = arith.constant 0 : index
    %c0_38 = arith.constant 0 : index
    %71 = vector.load %arg13[%c0_37, %c0_38] : memref<32x64xf32, #tpu.memory_space<vmem>>, vector<32x64xf32>
    %cst_39 = arith.constant dense<0.000000e+00> : vector<16x64xf32>
    %72 = tpu.matmul %70, %71, %cst_39 {dimension_numbers = #tpu.dot_dimension_numbers<[1], [0], [0], [1], [0, 0, 1, 1], [], []>} : vector<16x32xf32>, vector<32x64xf32>, vector<16x64xf32> -> vector<16x64xf32>
    %c0_40 = arith.constant 0 : index
    %c0_41 = arith.constant 0 : index
    %73 = vector.load %arg14[%c0_40, %c0_41] : memref<1x64xf32, #tpu.memory_space<vmem>>, vector<1x64xf32>
    %74 = vector.broadcast %73 : vector<1x64xf32> to vector<16x64xf32>
    %75 = arith.addf %72, %74 : vector<16x64xf32>
    %cst_42 = arith.constant 0.000000e+00 : f32
    %76 = vector.broadcast %cst_42 : f32 to vector<16x64xf32>
    %77 = arith.maximumf %75, %76 : vector<16x64xf32>
    %c0_43 = arith.constant 0 : index
    %c0_44 = arith.constant 0 : index
    %78 = vector.load %arg15[%c0_43, %c0_44] : memref<64x32xf32, #tpu.memory_space<vmem>>, vector<64x32xf32>
    %cst_45 = arith.constant dense<0.000000e+00> : vector<16x32xf32>
    %79 = tpu.matmul %77, %78, %cst_45 {dimension_numbers = #tpu.dot_dimension_numbers<[1], [0], [0], [1], [0, 0, 1, 1], [], []>} : vector<16x64xf32>, vector<64x32xf32>, vector<16x32xf32> -> vector<16x32xf32>
    %c0_46 = arith.constant 0 : index
    %c0_47 = arith.constant 0 : index
    %80 = vector.load %arg16[%c0_46, %c0_47] : memref<1x32xf32, #tpu.memory_space<vmem>>, vector<1x32xf32>
    %81 = vector.broadcast %80 : vector<1x32xf32> to vector<16x32xf32>
    %82 = arith.addf %79, %81 : vector<16x32xf32>
    %83 = arith.addf %70, %82 : vector<16x32xf32>
    %cst_48 = arith.constant dense<0.000000e+00> : vector<16xf32>
    %84 = vector.multi_reduction <add>, %83, %cst_48 [1] : vector<16x32xf32> to vector<16xf32>
    %85 = vector.shape_cast %84 : vector<16xf32> to vector<16x1xf32>
    %cst_49 = arith.constant 3.200000e+01 : f32
    %86 = vector.broadcast %cst_49 : f32 to vector<16x1xf32>
    %87 = arith.divf %85, %86 : vector<16x1xf32>
    %88 = vector.broadcast %87 : vector<16x1xf32> to vector<16x32xf32>
    %89 = arith.subf %83, %88 : vector<16x32xf32>
    %90 = arith.mulf %89, %89 : vector<16x32xf32>
    %cst_50 = arith.constant dense<0.000000e+00> : vector<16xf32>
    %91 = vector.multi_reduction <add>, %90, %cst_50 [1] : vector<16x32xf32> to vector<16xf32>
    %92 = vector.shape_cast %91 : vector<16xf32> to vector<16x1xf32>
    %cst_51 = arith.constant 3.200000e+01 : f32
    %93 = vector.broadcast %cst_51 : f32 to vector<16x1xf32>
    %94 = arith.divf %92, %93 : vector<16x1xf32>
    %95 = vector.broadcast %87 : vector<16x1xf32> to vector<16x32xf32>
    %96 = arith.subf %83, %95 : vector<16x32xf32>
    %cst_52 = arith.constant 9.99999974E-6 : f32
    %97 = vector.broadcast %cst_52 : f32 to vector<16x1xf32>
    %98 = arith.addf %94, %97 : vector<16x1xf32>
    %99 = math.rsqrt %98 : vector<16x1xf32>
    %100 = vector.broadcast %99 : vector<16x1xf32> to vector<16x32xf32>
    %101 = arith.mulf %96, %100 : vector<16x32xf32>
    %c0_53 = arith.constant 0 : index
    %c0_54 = arith.constant 0 : index
    %102 = vector.load %arg17[%c0_53, %c0_54] : memref<1x32xf32, #tpu.memory_space<vmem>>, vector<1x32xf32>
    %103 = vector.broadcast %102 : vector<1x32xf32> to vector<16x32xf32>
    %104 = arith.mulf %101, %103 : vector<16x32xf32>
    %c0_55 = arith.constant 0 : index
    %c0_56 = arith.constant 0 : index
    %105 = vector.load %arg18[%c0_55, %c0_56] : memref<1x32xf32, #tpu.memory_space<vmem>>, vector<1x32xf32>
    %106 = vector.broadcast %105 : vector<1x32xf32> to vector<16x32xf32>
    %107 = arith.addf %104, %106 : vector<16x32xf32>
    %c0_57 = arith.constant 0 : index
    %c0_58 = arith.constant 0 : index
    %108 = vector.load %arg19[%c0_57, %c0_58] : memref<16x32xf32, #tpu.memory_space<vmem>>, vector<16x32xf32>
    tpu.vector_store %arg19[%c0_57, %c0_58], %107 {strides = array<i32>} : memref<16x32xf32, #tpu.memory_space<vmem>>, vector<16x32xf32>,
    return
  }
}

</mosaic_0001>

<llo_original>
// kernel: encoder_layer.1
$region0: #{encoder_layer.1}
  #allocation0 [shape = 'u32[]', space=smem, size = 0x4, offset = 0x4, fixed_abs, tag = 'smem constant byte address 0x4 - core index']
  #allocation1 [shape = 'u32[144,128]{1,0:T(1,128)}', space=vmem, size = 0x12000, scoped, tag = 'internal scratch']
  %s0 = inlined_call_operand.vmem [shape: f32[16,32], index: 0, kind: input, shape index: {}]
  %s1 = inlined_call_operand.vmem [shape: f32[64,16], index: 1, kind: input, shape index: {}]
  %s2 = inlined_call_operand.vmem [shape: f32[64,32], index: 2, kind: input, shape index: {}]
  %s3 = inlined_call_operand.vmem [shape: f32[32,32], index: 3, kind: input, shape index: {}]
  %s4 = inlined_call_operand.vmem [shape: f32[1,32], index: 4, kind: input, shape index: {}]
  %s5 = inlined_call_operand.vmem [shape: f32[32,32], index: 5, kind: input, shape index: {}]
  %s6 = inlined_call_operand.vmem [shape: f32[1,32], index: 6, kind: input, shape index: {}]
  %s7 = inlined_call_operand.vmem [shape: f32[32,32], index: 7, kind: input, shape index: {}]
  %s8 = inlined_call_operand.vmem [shape: f32[1,32], index: 8, kind: input, shape index: {}]
  %s9 = inlined_call_operand.vmem [shape: f32[32,32], index: 9, kind: input, shape index: {}]
  %s10 = inlined_call_operand.vmem [shape: f32[1,32], index: 10, kind: input, shape index: {}]
  %s11 = inlined_call_operand.vmem [shape: f32[1,32], index: 11, kind: input, shape index: {}]
  %s12 = inlined_call_operand.vmem [shape: f32[1,32], index: 12, kind: input, shape index: {}]
  %s13 = inlined_call_operand.vmem [shape: f32[32,64], index: 13, kind: input, shape index: {}]
  %s14 = inlined_call_operand.vmem [shape: f32[1,64], index: 14, kind: input, shape index: {}]
  %s15 = inlined_call_operand.vmem [shape: f32[64,32], index: 15, kind: input, shape index: {}]
  %s16 = inlined_call_operand.vmem [shape: f32[1,32], index: 16, kind: input, shape index: {}]
  %s17 = inlined_call_operand.vmem [shape: f32[1,32], index: 17, kind: input, shape index: {}]
  %s18 = inlined_call_operand.vmem [shape: f32[1,32], index: 18, kind: input, shape index: {}]
  %s19 = inlined_call_operand.hbm [shape: f32[16,32], index: 19, kind: output, shape index: {}]
  %s20 = sld [smem:[#allocation0]]
  $region86: #{encoder_layer.1} parent=0
    _
  %s22 = ssub.s32 1, %s20
  %s23 = scalar_select 0, %s22, %s20
  $region1: #{encoder_layer.1} parent=0
    #allocation2 [shape = 'u8[8192]{0}', space=vmem, size = 0x2000, scoped, tag = 'output window, operand 0, single buffered']
    #allocation3 [shape = 's32[1]{0}', space=sflag, size = 0x4, scoped, tag = 'scoped memory for encoder_layer.1']
    %24 = vsyncpa [#allocation3], 0
    // Predicated region
    $region2: #{encoder_layer.1} parent=1 // pred_check
      _
    $region3: #{encoder_layer.1} parent=1 // pred_check_branch
      %26 = sbr.rel (0) target = $region5
    $region4: #{encoder_layer.1} parent=1 // pred_region
      _
    $region5: #{encoder_layer.1} parent=1 // pred_fallthru
      _
    // Predicated region
    $region6: #{encoder_layer.1} parent=1 // pred_check
      _
    $region7: #{encoder_layer.1} parent=1 // pred_check_branch
      %28 = sbr.rel (0) target = $region9
    $region8: #{encoder_layer.1} parent=1 // pred_region
      _
    $region9: #{encoder_layer.1} parent=1 // pred_fallthru
      _
    // Predicated region
    $region10: #{encoder_layer.1} parent=1 // pred_check
      _
    $region11: #{encoder_layer.1} parent=1 // pred_check_branch
      %30 = sbr.rel (0) target = $region13
    $region12: #{encoder_layer.1} parent=1 // pred_region
      _
    $region13: #{encoder_layer.1} parent=1 // pred_fallthru
      _
    // Predicated region
    $region14: #{encoder_layer.1} parent=1 // pred_check
      _
    $region15: #{encoder_layer.1} parent=1 // pred_check_branch
      %32 = sbr.rel (0) target = $region17
    $region16: #{encoder_layer.1} parent=1 // pred_region
      _
    $region17: #{encoder_layer.1} parent=1 // pred_fallthru
      _
    // Predicated region
    $region18: #{encoder_layer.1} parent=1 // pred_check
      _
    $region19: #{encoder_layer.1} parent=1 // pred_check_branch
      %34 = sbr.rel (0) target = $region21
    $region20: #{encoder_layer.1} parent=1 // pred_region
      _
    $region21: #{encoder_layer.1} parent=1 // pred_fallthru
      _
    // Predicated region
    $region22: #{encoder_layer.1} parent=1 // pred_check
      _
    $region23: #{encoder_layer.1} parent=1 // pred_check_branch
      %36 = sbr.rel (0) target = $region25
    $region24: #{encoder_layer.1} parent=1 // pred_region
      _
    $region25: #{encoder_layer.1} parent=1 // pred_fallthru
      _
    // Predicated region
    $region26: #{encoder_layer.1} parent=1 // pred_check
      _
    $region27: #{encoder_layer.1} parent=1 // pred_check_branch
      %38 = sbr.rel (0) target = $region29
    $region28: #{encoder_layer.1} parent=1 // pred_region
      _
    $region29: #{encoder_layer.1} parent=1 // pred_fallthru
      _
    // Predicated region
    $region30: #{encoder_layer.1} parent=1 // pred_check
      _
    $region31: #{encoder_layer.1} parent=1 // pred_check_branch
      %40 = sbr.rel (0) target = $region33
    $region32: #{encoder_layer.1} parent=1 // pred_region
      _
    $region33: #{encoder_layer.1} parent=1 // pred_fallthru
      _
    // Predicated region
    $region34: #{encoder_layer.1} parent=1 // pred_check
      _
    $region35: #{encoder_layer.1} parent=1 // pred_check_branch
      %42 = sbr.rel (0) target = $region37
    $region36: #{encoder_layer.1} parent=1 // pred_region
      _
    $region37: #{encoder_layer.1} parent=1 // pred_fallthru
      _
    // Predicated region
    $region38: #{encoder_layer.1} parent=1 // pred_check
      _
    $region39: #{encoder_layer.1} parent=1 // pred_check_branch
      %44 = sbr.rel (0) target = $region41
    $region40: #{encoder_layer.1} parent=1 // pred_region
      _
    $region41: #{encoder_layer.1} parent=1 // pred_fallthru
      _
    // Predicated region
    $region42: #{encoder_layer.1} parent=1 // pred_check
      _
    $region43: #{encoder_layer.1} parent=1 // pred_check_branch
      %46 = sbr.rel (0) target = $region45
    $region44: #{encoder_layer.1} parent=1 // pred_region
      _
    $region45: #{encoder_layer.1} parent=1 // pred_fallthru
      _
    // Predicated region
    $region46: #{encoder_layer.1} parent=1 // pred_check
      _
    $region47: #{encoder_layer.1} parent=1 // pred_check_branch
      %48 = sbr.rel (0) target = $region49
    $region48: #{encoder_layer.1} parent=1 // pred_region
      _
    $region49: #{encoder_layer.1} parent=1 // pred_fallthru
      _
    // Predicated region
    $region50: #{encoder_layer.1} parent=1 // pred_check
      _
    $region51: #{encoder_layer.1} parent=1 // pred_check_branch
      %50 = sbr.rel (0) target = $region53
    $region52: #{encoder_layer.1} parent=1 // pred_region
      _
    $region53: #{encoder_layer.1} parent=1 // pred_fallthru
      _
    // Predicated region
    $region54: #{encoder_layer.1} parent=1 // pred_check
      _
    $region55: #{encoder_layer.1} parent=1 // pred_check_branch
      %52 = sbr.rel (0) target = $region57
    $region56: #{encoder_layer.1} parent=1 // pred_region
      _
    $region57: #{encoder_layer.1} parent=1 // pred_fallthru
      _
    // Predicated region
    $region58: #{encoder_layer.1} parent=1 // pred_check
      _
    $region59: #{encoder_layer.1} parent=1 // pred_check_branch
      %54 = sbr.rel (0) target = $region61
    $region60: #{encoder_layer.1} parent=1 // pred_region
      _
    $region61: #{encoder_layer.1} parent=1 // pred_fallthru
      _
    // Predicated region
    $region62: #{encoder_layer.1} parent=1 // pred_check
      _
    $region63: #{encoder_layer.1} parent=1 // pred_check_branch
      %56 = sbr.rel (0) target = $region65
    $region64: #{encoder_layer.1} parent=1 // pred_region
      _
    $region65: #{encoder_layer.1} parent=1 // pred_fallthru
      _
    // Predicated region
    $region66: #{encoder_layer.1} parent=1 // pred_check
      _
    $region67: #{encoder_layer.1} parent=1 // pred_check_branch
      %58 = sbr.rel (0) target = $region69
    $region68: #{encoder_layer.1} parent=1 // pred_region
      _
    $region69: #{encoder_layer.1} parent=1 // pred_fallthru
      _
    // Predicated region
    $region70: #{encoder_layer.1} parent=1 // pred_check
      _
    $region71: #{encoder_layer.1} parent=1 // pred_check_branch
      %60 = sbr.rel (0) target = $region73
    $region72: #{encoder_layer.1} parent=1 // pred_region
      _
    $region73: #{encoder_layer.1} parent=1 // pred_fallthru
      _
    // Predicated region
    $region74: #{encoder_layer.1} parent=1 // pred_check
      _
    $region75: #{encoder_layer.1} parent=1 // pred_check_branch
      %62 = sbr.rel (0) target = $region77
    $region76: #{encoder_layer.1} parent=1 // pred_region
      _
    $region77: #{encoder_layer.1} parent=1 // pred_fallthru
      _
    %v63 = vld [vmem:[%s0] sm:$0xff]
    %v64 = vld [vmem:[%s0 + $0x8] sm:$0xff]
    %v65 = vld [vmem:[%s2] sm:$0xff]
    %v66 = vld [vmem:[%s2 + $0x8] sm:$0xff]
    %v67 = vld [vmem:[%s2 + $0x10] sm:$0xff]
    %v68 = vld [vmem:[%s2 + $0x18] sm:$0xff]
    %v69 = vld [vmem:[%s2 + $0x20] sm:$0xff]
    %v70 = vld [vmem:[%s2 + $0x28] sm:$0xff]
    %v71 = vld [vmem:[%s2 + $0x30] sm:$0xff]
    %v72 = vld [vmem:[%s2 + $0x38] sm:$0xff]
    %v73 = vld [vmem:[%s3] sm:$0xff]
    %v74 = vld [vmem:[%s3 + $0x8] sm:$0xff]
    %v75 = vld [vmem:[%s3 + $0x10] sm:$0xff]
    %v76 = vld [vmem:[%s3 + $0x18] sm:$0xff]
    %v77 = vld [vmem:[%s4] sm:$0x1]
    %v79 = vlaneseq
    %v80 = vshrl.u32 %v79, 7
    %v81 = vsub.s32 0, %v80
    %v82 = vrot.slane %v77, %v81
    %vm84 = vcmask 261120
    %v86 = vsel %vm84, %v63, 0
    %v89 = vsel %vm84, %v64, 0
    %91 = vmatprep.subr.mxu0 0.0
    %92 = vmatpush1.msra.mxu0 0.0
    %93 = vmatprep.subr.mxu0 0.0
    %94 = vmatpush1.msra.mxu0 0.0
    %95 = vmatprep.subr.mxu0 0.0
    %96 = vmatpush1.msra.mxu0 0.0
    %97 = vmatprep.subr.mxu0 0.0
    %98 = vmatpush1.msra.mxu0 0.0
    %99 = vmatprep.subr.mxu0 0.0
    %100 = vmatpush1.msra.mxu0 0.0
    %101 = vmatprep.subr.mxu0 0.0
    %102 = vmatpush1.msra.mxu0 0.0
    %103 = vmatprep.subr.mxu0 0.0
    %104 = vmatpush1.msra.mxu0 0.0
    %105 = vmatprep.subr.mxu0 0.0
    %106 = vmatpush1.msra.mxu0 0.0
    %107 = vmatprep.subr.mxu0 0.0
    %108 = vmatpush1.msra.mxu0 0.0
    %109 = vmatprep.subr.mxu0 0.0
    %110 = vmatpush1.msra.mxu0 0.0
    %111 = vmatprep.subr.mxu0 0.0
    %112 = vmatpush1.msra.mxu0 0.0
    %113 = vmatprep.subr.mxu0 0.0
    %114 = vmatpush1.msra.mxu0 0.0
    %115 = vmatprep.subr.mxu0 0.0
    %116 = vmatpush1.msra.mxu0 %v76
    %117 = vmatprep.subr.mxu0 0.0
    %118 = vmatpush1.msra.mxu0 %v75
    %119 = vmatprep.subr.mxu0 0.0
    %120 = vmatpush1.msra.mxu0 %v74
    %121 = vmatprep.subr.mxu0 0.0
    %122 = vmatpush1.msra.mxu0 %v73
    %123 = vmatprep.subr.mxu0 0.0
    %124 = vmatpush2.msra.mxu0 0.0
    %125 = vmatprep.subr.mxu0 0.0
    %126 = vmatpush2.msra.mxu0 0.0
    %127 = vmatprep.subr.mxu0 0.0
    %128 = vmatpush2.msra.mxu0 0.0
    %129 = vmatprep.subr.mxu0 0.0
    %130 = vmatpush2.msra.mxu0 0.0
    %131 = vmatprep.subr.mxu0 0.0
    %132 = vmatpush2.msra.mxu0 0.0
    %133 = vmatprep.subr.mxu0 0.0
    %134 = vmatpush2.msra.mxu0 0.0
    %135 = vmatprep.subr.mxu0 0.0
    %136 = vmatpush2.msra.mxu0 0.0
    %137 = vmatprep.subr.mxu0 0.0
    %138 = vmatpush2.msra.mxu0 0.0
    %139 = vmatprep.subr.mxu0 0.0
    %140 = vmatpush2.msra.mxu0 0.0
    %141 = vmatprep.subr.mxu0 0.0
    %142 = vmatpush2.msra.mxu0 0.0
    %143 = vmatprep.subr.mxu0 0.0
    %144 = vmatpush2.msra.mxu0 0.0
    %145 = vmatprep.subr.mxu0 0.0
    %146 = vmatpush2.msra.mxu0 0.0
    %147 = vmatprep.subr.mxu0 0.0
    %148 = vmatpush2.msra.mxu0 0.0
    %149 = vmatprep.subr.mxu0 0.0
    %150 = vmatpush2.msra.mxu0 0.0
    %151 = vmatprep.subr.mxu0 0.0
    %152 = vmatpush2.msra.mxu0 0.0
    %153 = vmatprep.subr.mxu0 0.0
    %154 = vmatpush2.msra.mxu0 0.0
    %155 = vmatprep.mubr.f32.mxu0 0.0
    %156 = vmatmul.mubr.f32.gmra.mxu0 %v86
    %v157 = vpop.f32.mrf.mxu0
    %v158 = vadd.f32 %v82, %v157
    %v159 = vpop.f32.mrf.mxu0
    %160 = vmatprep.mubr.f32.mxu0 0.0
    %161 = vmatmul.mubr.f32.gmra.mxu0 %v89
    %v162 = vpop.f32.mrf.mxu0
    %v163 = vadd.f32 %v82, %v162
    %v164 = vpop.f32.mrf.mxu0
    %165 = vdwg.mxu0
    %v166 = vld [vmem:[%s5] sm:$0xff]
    %v167 = vld [vmem:[%s5 + $0x8] sm:$0xff]
    %v168 = vld [vmem:[%s5 + $0x10] sm:$0xff]
    %v169 = vld [vmem:[%s5 + $0x18] sm:$0xff]
    %v170 = vld [vmem:[%s6] sm:$0x1]
    %v172 = vlaneseq
    %v173 = vshrl.u32 %v172, 7
    %v174 = vsub.s32 0, %v173
    %v175 = vrot.slane %v170, %v174
    %177 = vmatprep.subr.mxu0 0.0
    %178 = vmatpush1.msra.mxu0 0.0
    %179 = vmatprep.subr.mxu0 0.0
    %180 = vmatpush1.msra.mxu0 0.0
    %181 = vmatprep.subr.mxu0 0.0
    %182 = vmatpush1.msra.mxu0 0.0
    %183 = vmatprep.subr.mxu0 0.0
    %184 = vmatpush1.msra.mxu0 0.0
    %185 = vmatprep.subr.mxu0 0.0
    %186 = vmatpush1.msra.mxu0 0.0
    %187 = vmatprep.subr.mxu0 0.0
    %188 = vmatpush1.msra.mxu0 0.0
    %189 = vmatprep.subr.mxu0 0.0
    %190 = vmatpush1.msra.mxu0 0.0
    %191 = vmatprep.subr.mxu0 0.0
    %192 = vmatpush1.msra.mxu0 0.0
    %193 = vmatprep.subr.mxu0 0.0
    %194 = vmatpush1.msra.mxu0 0.0
    %195 = vmatprep.subr.mxu0 0.0
    %196 = vmatpush1.msra.mxu0 0.0
    %197 = vmatprep.subr.mxu0 0.0
    %198 = vmatpush1.msra.mxu0 0.0
    %199 = vmatprep.subr.mxu0 0.0
    %200 = vmatpush1.msra.mxu0 0.0
    %201 = vmatprep.subr.mxu0 0.0
    %202 = vmatpush1.msra.mxu0 %v169
    %203 = vmatprep.subr.mxu0 0.0
    %204 = vmatpush1.msra.mxu0 %v168
    %205 = vmatprep.subr.mxu0 0.0
    %206 = vmatpush1.msra.mxu0 %v167
    %207 = vmatprep.subr.mxu0 0.0
    %208 = vmatpush1.msra.mxu0 %v166
    %209 = vmatprep.subr.mxu0 0.0
    %210 = vmatpush2.msra.mxu0 0.0
    %211 = vmatprep.subr.mxu0 0.0
    %212 = vmatpush2.msra.mxu0 0.0
    %213 = vmatprep.subr.mxu0 0.0
    %214 = vmatpush2.msra.mxu0 0.0
    %215 = vmatprep.subr.mxu0 0.0
    %216 = vmatpush2.msra.mxu0 0.0
    %217 = vmatprep.subr.mxu0 0.0
    %218 = vmatpush2.msra.mxu0 0.0
    %219 = vmatprep.subr.mxu0 0.0
    %220 = vmatpush2.msra.mxu0 0.0
    %221 = vmatprep.subr.mxu0 0.0
    %222 = vmatpush2.msra.mxu0 0.0
    %223 = vmatprep.subr.mxu0 0.0
    %224 = vmatpush2.msra.mxu0 0.0
    %225 = vmatprep.subr.mxu0 0.0
    %226 = vmatpush2.msra.mxu0 0.0
    %227 = vmatprep.subr.mxu0 0.0
    %228 = vmatpush2.msra.mxu0 0.0
    %229 = vmatprep.subr.mxu0 0.0
    %230 = vmatpush2.msra.mxu0 0.0
    %231 = vmatprep.subr.mxu0 0.0
    %232 = vmatpush2.msra.mxu0 0.0
    %233 = vmatprep.subr.mxu0 0.0
    %234 = vmatpush2.msra.mxu0 0.0
    %235 = vmatprep.subr.mxu0 0.0
    %236 = vmatpush2.msra.mxu0 0.0
    %237 = vmatprep.subr.mxu0 0.0
    %238 = vmatpush2.msra.mxu0 0.0
    %239 = vmatprep.subr.mxu0 0.0
    %240 = vmatpush2.msra.mxu0 0.0
    %241 = vmatprep.mubr.f32.mxu0 0.0
    %242 = vmatmul.mubr.f32.gmra.mxu0 %v86
    %v243 = vpop.f32.mrf.mxu0
    %v244 = vadd.f32 %v175, %v243
    %v245 = vpop.f32.mrf.mxu0
    %246 = vmatprep.mubr.f32.mxu0 0.0
    %247 = vmatmul.mubr.f32.gmra.mxu0 %v89
    %v248 = vpop.f32.mrf.mxu0
    %v249 = vadd.f32 %v175, %v248
    %v250 = vpop.f32.mrf.mxu0
    %251 = vdwg.mxu0
    %v252 = vld [vmem:[%s7] sm:$0xff]
    %v253 = vld [vmem:[%s7 + $0x8] sm:$0xff]
    %v254 = vld [vmem:[%s7 + $0x10] sm:$0xff]
    %v255 = vld [vmem:[%s7 + $0x18] sm:$0xff]
    %v256 = vld [vmem:[%s8] sm:$0x1]
    %v258 = vlaneseq
    %v259 = vshrl.u32 %v258, 7
    %v260 = vsub.s32 0, %v259
    %v261 = vrot.slane %v256, %v260
    %263 = vmatprep.subr.mxu0 0.0
    %264 = vmatpush1.msra.mxu0 0.0
    %265 = vmatprep.subr.mxu0 0.0
    %266 = vmatpush1.msra.mxu0 0.0
    %267 = vmatprep.subr.mxu0 0.0
    %268 = vmatpush1.msra.mxu0 0.0
    %269 = vmatprep.subr.mxu0 0.0
    %270 = vmatpush1.msra.mxu0 0.0
    %271 = vmatprep.subr.mxu0 0.0
    %272 = vmatpush1.msra.mxu0 0.0
    %273 = vmatprep.subr.mxu0 0.0
    %274 = vmatpush1.msra.mxu0 0.0
    %275 = vmatprep.subr.mxu0 0.0
    %276 = vmatpush1.msra.mxu0 0.0
    %277 = vmatprep.subr.mxu0 0.0
    %278 = vmatpush1.msra.mxu0 0.0
    %279 = vmatprep.subr.mxu0 0.0
    %280 = vmatpush1.msra.mxu0 0.0
    %281 = vmatprep.subr.mxu0 0.0
    %282 = vmatpush1.msra.mxu0 0.0
    %283 = vmatprep.subr.mxu0 0.0
    %284 = vmatpush1.msra.mxu0 0.0
    %285 = vmatprep.subr.mxu0 0.0
    %286 = vmatpush1.msra.mxu0 0.0
    %287 = vmatprep.subr.mxu0 0.0
    %288 = vmatpush1.msra.mxu0 %v255
    %289 = vmatprep.subr.mxu0 0.0
    %290 = vmatpush1.msra.mxu0 %v254
    %291 = vmatprep.subr.mxu0 0.0
    %292 = vmatpush1.msra.mxu0 %v253
    %293 = vmatprep.subr.mxu0 0.0
    %294 = vmatpush1.msra.mxu0 %v252
    %295 = vmatprep.subr.mxu0 0.0
    %296 = vmatpush2.msra.mxu0 0.0
    %297 = vmatprep.subr.mxu0 0.0
    %298 = vmatpush2.msra.mxu0 0.0
    %299 = vmatprep.subr.mxu0 0.0
    %300 = vmatpush2.msra.mxu0 0.0
    %301 = vmatprep.subr.mxu0 0.0
    %302 = vmatpush2.msra.mxu0 0.0
    %303 = vmatprep.subr.mxu0 0.0
    %304 = vmatpush2.msra.mxu0 0.0
    %305 = vmatprep.subr.mxu0 0.0
    %306 = vmatpush2.msra.mxu0 0.0
    %307 = vmatprep.subr.mxu0 0.0
    %308 = vmatpush2.msra.mxu0 0.0
    %309 = vmatprep.subr.mxu0 0.0
    %310 = vmatpush2.msra.mxu0 0.0
    %311 = vmatprep.subr.mxu0 0.0
    %312 = vmatpush2.msra.mxu0 0.0
    %313 = vmatprep.subr.mxu0 0.0
    %314 = vmatpush2.msra.mxu0 0.0
    %315 = vmatprep.subr.mxu0 0.0
    %316 = vmatpush2.msra.mxu0 0.0
    %317 = vmatprep.subr.mxu0 0.0
    %318 = vmatpush2.msra.mxu0 0.0
    %319 = vmatprep.subr.mxu0 0.0
    %320 = vmatpush2.msra.mxu0 0.0
    %321 = vmatprep.subr.mxu0 0.0
    %322 = vmatpush2.msra.mxu0 0.0
    %323 = vmatprep.subr.mxu0 0.0
    %324 = vmatpush2.msra.mxu0 0.0
    %325 = vmatprep.subr.mxu0 0.0
    %326 = vmatpush2.msra.mxu0 0.0
    %327 = vmatprep.mubr.f32.mxu0 0.0
    %328 = vmatmul.mubr.f32.gmra.mxu0 %v86
    %v329 = vpop.f32.mrf.mxu0
    %v330 = vadd.f32 %v261, %v329
    %v331 = vpop.f32.mrf.mxu0
    %332 = vmatprep.mubr.f32.mxu0 0.0
    %333 = vmatmul.mubr.f32.gmra.mxu0 %v89
    %v334 = vpop.f32.mrf.mxu0
    %v335 = vadd.f32 %v261, %v334
    %v336 = vpop.f32.mrf.mxu0
    %337 = vdwg.mxu0
    %v338 = vmul.f32 %v158, %v65
    %v339 = vmul.f32 %v163, %v66
    %v340 = vmul.f32 %v158, %v67
    %v341 = vmul.f32 %v163, %v68
    %v342 = vmul.f32 %v158, %v69
    %v343 = vmul.f32 %v163, %v70
    %v344 = vmul.f32 %v158, %v71
    %v345 = vmul.f32 %v163, %v72
    %v346 = vld [vmem:[%s1] sm:$0xff]
    %v347 = vld [vmem:[%s1 + $0x8] sm:$0xff]
    %v348 = vld [vmem:[%s1 + $0x10] sm:$0xff]
    %v349 = vld [vmem:[%s1 + $0x18] sm:$0xff]
    %v350 = vld [vmem:[%s1 + $0x20] sm:$0xff]
    %v351 = vld [vmem:[%s1 + $0x28] sm:$0xff]
    %v352 = vld [vmem:[%s1 + $0x30] sm:$0xff]
    %v353 = vld [vmem:[%s1 + $0x38] sm:$0xff]
    %v355 = vsel %vm84, %v338, 0
    %v358 = vsel %vm84, %v339, 0
    %v361 = vsel %vm84, %v340, 0
    %v364 = vsel %vm84, %v341, 0
    %v367 = vsel %vm84, %v342, 0
    %v370 = vsel %vm84, %v343, 0
    %v373 = vsel %vm84, %v344, 0
    %v376 = vsel %vm84, %v345, 0
    %v379 = vsel %vm84, %v244, 0
    %v382 = vsel %vm84, %v249, 0
    %384 = vmatprep.subr.mxu0 0.0
    %385 = vmatpush1.xpose.msra.mxu0 0.0
    %386 = vmatprep.subr.mxu0 0.0
    %387 = vmatpush1.xpose.msra.mxu0 0.0
    %388 = vmatprep.subr.mxu0 0.0
    %389 = vmatpush1.xpose.msra.mxu0 0.0
    %390 = vmatprep.subr.mxu0 0.0
    %391 = vmatpush1.xpose.msra.mxu0 0.0
    %392 = vmatprep.subr.mxu0 0.0
    %393 = vmatpush1.xpose.msra.mxu0 0.0
    %394 = vmatprep.subr.mxu0 0.0
    %395 = vmatpush1.xpose.msra.mxu0 0.0
    %396 = vmatprep.subr.mxu0 0.0
    %397 = vmatpush1.xpose.msra.mxu0 0.0
    %398 = vmatprep.subr.mxu0 0.0
    %399 = vmatpush1.xpose.msra.mxu0 0.0
    %400 = vmatprep.subr.mxu0 0.0
    %401 = vmatpush1.xpose.msra.mxu0 0.0
    %402 = vmatprep.subr.mxu0 0.0
    %403 = vmatpush1.xpose.msra.mxu0 0.0
    %404 = vmatprep.subr.mxu0 0.0
    %405 = vmatpush1.xpose.msra.mxu0 0.0
    %406 = vmatprep.subr.mxu0 0.0
    %407 = vmatpush1.xpose.msra.mxu0 0.0
    %408 = vmatprep.subr.mxu0 0.0
    %409 = vmatpush1.xpose.msra.mxu0 0.0
    %410 = vmatprep.subr.mxu0 0.0
    %411 = vmatpush1.xpose.msra.mxu0 0.0
    %412 = vmatprep.subr.mxu0 0.0
    %413 = vmatpush1.xpose.msra.mxu0 %v382
    %414 = vmatprep.subr.mxu0 0.0
    %415 = vmatpush1.xpose.msra.mxu0 %v379
    %416 = vmatprep.subr.mxu0 0.0
    %417 = vmatpush2.xpose.msra.mxu0 0.0
    %418 = vmatprep.subr.mxu0 0.0
    %419 = vmatpush2.xpose.msra.mxu0 0.0
    %420 = vmatprep.subr.mxu0 0.0
    %421 = vmatpush2.xpose.msra.mxu0 0.0
    %422 = vmatprep.subr.mxu0 0.0
    %423 = vmatpush2.xpose.msra.mxu0 0.0
    %424 = vmatprep.subr.mxu0 0.0
    %425 = vmatpush2.xpose.msra.mxu0 0.0
    %426 = vmatprep.subr.mxu0 0.0
    %427 = vmatpush2.xpose.msra.mxu0 0.0
    %428 = vmatprep.subr.mxu0 0.0
    %429 = vmatpush2.xpose.msra.mxu0 0.0
    %430 = vmatprep.subr.mxu0 0.0
    %431 = vmatpush2.xpose.msra.mxu0 0.0
    %432 = vmatprep.subr.mxu0 0.0
    %433 = vmatpush2.xpose.msra.mxu0 0.0
    %434 = vmatprep.subr.mxu0 0.0
    %435 = vmatpush2.xpose.msra.mxu0 0.0
    %436 = vmatprep.subr.mxu0 0.0
    %437 = vmatpush2.xpose.msra.mxu0 0.0
    %438 = vmatprep.subr.mxu0 0.0
    %439 = vmatpush2.xpose.msra.mxu0 0.0
    %440 = vmatprep.subr.mxu0 0.0
    %441 = vmatpush2.xpose.msra.mxu0 0.0
    %442 = vmatprep.subr.mxu0 0.0
    %443 = vmatpush2.xpose.msra.mxu0 0.0
    %444 = vmatprep.subr.mxu0 0.0
    %445 = vmatpush2.xpose.msra.mxu0 0.0
    %446 = vmatprep.subr.mxu0 0.0
    %447 = vmatpush2.xpose.msra.mxu0 0.0
    %448 = vmatprep.mubr.f32.mxu0 0.0
    %449 = vmatmul.mubr.f32.gmra.mxu0 %v355
    %v450 = vpop.f32.mrf.mxu0
    %v451 = vadd.f32 %v346, %v450
    %v452 = vpop.f32.mrf.mxu0
    %453 = vmatprep.mubr.f32.mxu0 0.0
    %454 = vmatmul.mubr.f32.gmra.mxu0 %v358
    %v455 = vpop.f32.mrf.mxu0
    %v456 = vadd.f32 %v347, %v455
    %v457 = vpop.f32.mrf.mxu0
    %458 = vmatprep.mubr.f32.mxu0 0.0
    %459 = vmatmul.mubr.f32.gmra.mxu0 %v361
    %v460 = vpop.f32.mrf.mxu0
    %v461 = vadd.f32 %v348, %v460
    %v462 = vpop.f32.mrf.mxu0
    %463 = vmatprep.mubr.f32.mxu0 0.0
    %464 = vmatmul.mubr.f32.gmra.mxu0 %v364
    %v465 = vpop.f32.mrf.mxu0
    %v466 = vadd.f32 %v349, %v465
    %v467 = vpop.f32.mrf.mxu0
    %468 = vmatprep.mubr.f32.mxu0 0.0
    %469 = vmatmul.mubr.f32.gmra.mxu0 %v367
    %v470 = vpop.f32.mrf.mxu0
    %v471 = vadd.f32 %v350, %v470
    %v472 = vpop.f32.mrf.mxu0
    %473 = vmatprep.mubr.f32.mxu0 0.0
    %474 = vmatmul.mubr.f32.gmra.mxu0 %v370
    %v475 = vpop.f32.mrf.mxu0
    %v476 = vadd.f32 %v351, %v475
    %v477 = vpop.f32.mrf.mxu0
    %478 = vmatprep.mubr.f32.mxu0 0.0
    %479 = vmatmul.mubr.f32.gmra.mxu0 %v373
    %v480 = vpop.f32.mrf.mxu0
    %v481 = vadd.f32 %v352, %v480
    %v482 = vpop.f32.mrf.mxu0
    %483 = vmatprep.mubr.f32.mxu0 0.0
    %484 = vmatmul.mubr.f32.gmra.mxu0 %v376
    %v485 = vpop.f32.mrf.mxu0
    %v486 = vadd.f32 %v353, %v485
    %v487 = vpop.f32.mrf.mxu0
    %488 = vdwg.mxu0
    %vm489 = vcmask 130048
    %v490 = vsel %vm489, %v451, -inf
    %491 = vmax.xlane.f32.xlu0 %v490
    %v492 = vpop.xlane.xlu0 %491
    %v493 = vsel %vm489, %v456, -inf
    %494 = vmax.xlane.f32.xlu0 %v493
    %v495 = vpop.xlane.xlu0 %494
    %v496 = vsel %vm489, %v461, -inf
    %497 = vmax.xlane.f32.xlu0 %v496
    %v498 = vpop.xlane.xlu0 %497
    %v499 = vsel %vm489, %v466, -inf
    %500 = vmax.xlane.f32.xlu0 %v499
    %v501 = vpop.xlane.xlu0 %500
    %v502 = vsel %vm489, %v471, -inf
    %503 = vmax.xlane.f32.xlu0 %v502
    %v504 = vpop.xlane.xlu0 %503
    %v505 = vsel %vm489, %v476, -inf
    %506 = vmax.xlane.f32.xlu0 %v505
    %v507 = vpop.xlane.xlu0 %506
    %v508 = vsel %vm489, %v481, -inf
    %509 = vmax.xlane.f32.xlu0 %v508
    %v510 = vpop.xlane.xlu0 %509
    %v511 = vsel %vm489, %v486, -inf
    %512 = vmax.xlane.f32.xlu0 %v511
    %v513 = vpop.xlane.xlu0 %512
    %v514 = vsub.f32 %v451, %v492
    %v515 = vsub.f32 %v456, %v495
    %v516 = vsub.f32 %v461, %v498
    %v517 = vsub.f32 %v466, %v501
    %v518 = vsub.f32 %v471, %v504
    %v519 = vsub.f32 %v476, %v507
    %v520 = vsub.f32 %v481, %v510
    %v521 = vsub.f32 %v486, %v513
    %v522 = vmul.f32 %v514, 1.442695
    %v523 = vpow.pop %v522
    %v524 = vmul.f32 %v515, 1.442695
    %v525 = vpow.pop %v524
    %v526 = vmul.f32 %v516, 1.442695
    %v527 = vpow.pop %v526
    %v528 = vmul.f32 %v517, 1.442695
    %v529 = vpow.pop %v528
    %v530 = vmul.f32 %v518, 1.442695
    %v531 = vpow.pop %v530
    %v532 = vmul.f32 %v519, 1.442695
    %v533 = vpow.pop %v532
    %v534 = vmul.f32 %v520, 1.442695
    %v535 = vpow.pop %v534
    %v536 = vmul.f32 %v521, 1.442695
    %v537 = vpow.pop %v536
    %v538 = vsel %vm489, %v523, 0.0
    %539 = vadd.xlane.f32.xlu0 %v538
    %v540 = vpop.xlane.xlu0 %539
    %v541 = vsel %vm489, %v525, 0.0
    %542 = vadd.xlane.f32.xlu0 %v541
    %v543 = vpop.xlane.xlu0 %542
    %v544 = vsel %vm489, %v527, 0.0
    %545 = vadd.xlane.f32.xlu0 %v544
    %v546 = vpop.xlane.xlu0 %545
    %v547 = vsel %vm489, %v529, 0.0
    %548 = vadd.xlane.f32.xlu0 %v547
    %v549 = vpop.xlane.xlu0 %548
    %v550 = vsel %vm489, %v531, 0.0
    %551 = vadd.xlane.f32.xlu0 %v550
    %v552 = vpop.xlane.xlu0 %551
    %v553 = vsel %vm489, %v533, 0.0
    %554 = vadd.xlane.f32.xlu0 %v553
    %v555 = vpop.xlane.xlu0 %554
    %v556 = vsel %vm489, %v535, 0.0
    %557 = vadd.xlane.f32.xlu0 %v556
    %v558 = vpop.xlane.xlu0 %557
    %v559 = vsel %vm489, %v537, 0.0
    %560 = vadd.xlane.f32.xlu0 %v559
    %v561 = vpop.xlane.xlu0 %560
    %v562 = vrcp.pop %v540
    %v563 = vmul.f32 %v523, %v562
    %v564 = vrcp.pop %v543
    %v565 = vmul.f32 %v525, %v564
    %v566 = vrcp.pop %v546
    %v567 = vmul.f32 %v527, %v566
    %v568 = vrcp.pop %v549
    %v569 = vmul.f32 %v529, %v568
    %v570 = vrcp.pop %v552
    %v571 = vmul.f32 %v531, %v570
    %v572 = vrcp.pop %v555
    %v573 = vmul.f32 %v533, %v572
    %v574 = vrcp.pop %v558
    %v575 = vmul.f32 %v535, %v574
    %v576 = vrcp.pop %v561
    %v577 = vmul.f32 %v537, %v576
    %v579 = vsel %vm489, %v563, 0
    %v582 = vsel %vm489, %v565, 0
    %v585 = vsel %vm489, %v567, 0
    %v588 = vsel %vm489, %v569, 0
    %v591 = vsel %vm489, %v571, 0
    %v594 = vsel %vm489, %v573, 0
    %v597 = vsel %vm489, %v575, 0
    %v600 = vsel %vm489, %v577, 0
    %602 = vmatprep.subr.mxu0 0.0
    %603 = vmatpush1.msra.mxu0 0.0
    %604 = vmatprep.subr.mxu0 0.0
    %605 = vmatpush1.msra.mxu0 0.0
    %606 = vmatprep.subr.mxu0 0.0
    %607 = vmatpush1.msra.mxu0 0.0
    %608 = vmatprep.subr.mxu0 0.0
    %609 = vmatpush1.msra.mxu0 0.0
    %610 = vmatprep.subr.mxu0 0.0
    %611 = vmatpush1.msra.mxu0 0.0
    %612 = vmatprep.subr.mxu0 0.0
    %613 = vmatpush1.msra.mxu0 0.0
    %614 = vmatprep.subr.mxu0 0.0
    %615 = vmatpush1.msra.mxu0 0.0
    %616 = vmatprep.subr.mxu0 0.0
    %617 = vmatpush1.msra.mxu0 0.0
    %618 = vmatprep.subr.mxu0 0.0
    %619 = vmatpush1.msra.mxu0 0.0
    %620 = vmatprep.subr.mxu0 0.0
    %621 = vmatpush1.msra.mxu0 0.0
    %622 = vmatprep.subr.mxu0 0.0
    %623 = vmatpush1.msra.mxu0 0.0
    %624 = vmatprep.subr.mxu0 0.0
    %625 = vmatpush1.msra.mxu0 0.0
    %626 = vmatprep.subr.mxu0 0.0
    %627 = vmatpush1.msra.mxu0 0.0
    %628 = vmatprep.subr.mxu0 0.0
    %629 = vmatpush1.msra.mxu0 0.0
    %630 = vmatprep.subr.mxu0 0.0
    %631 = vmatpush1.msra.mxu0 %v335
    %632 = vmatprep.subr.mxu0 0.0
    %633 = vmatpush1.msra.mxu0 %v330
    %634 = vmatprep.subr.mxu0 0.0
    %635 = vmatpush2.msra.mxu0 0.0
    %636 = vmatprep.subr.mxu0 0.0
    %637 = vmatpush2.msra.mxu0 0.0
    %638 = vmatprep.subr.mxu0 0.0
    %639 = vmatpush2.msra.mxu0 0.0
    %640 = vmatprep.subr.mxu0 0.0
    %641 = vmatpush2.msra.mxu0 0.0
    %642 = vmatprep.subr.mxu0 0.0
    %643 = vmatpush2.msra.mxu0 0.0
    %644 = vmatprep.subr.mxu0 0.0
    %645 = vmatpush2.msra.mxu0 0.0
    %646 = vmatprep.subr.mxu0 0.0
    %647 = vmatpush2.msra.mxu0 0.0
    %648 = vmatprep.subr.mxu0 0.0
    %649 = vmatpush2.msra.mxu0 0.0
    %650 = vmatprep.subr.mxu0 0.0
    %651 = vmatpush2.msra.mxu0 0.0
    %652 = vmatprep.subr.mxu0 0.0
    %653 = vmatpush2.msra.mxu0 0.0
    %654 = vmatprep.subr.mxu0 0.0
    %655 = vmatpush2.msra.mxu0 0.0
    %656 = vmatprep.subr.mxu0 0.0
    %657 = vmatpush2.msra.mxu0 0.0
    %658 = vmatprep.subr.mxu0 0.0
    %659 = vmatpush2.msra.mxu0 0.0
    %660 = vmatprep.subr.mxu0 0.0
    %661 = vmatpush2.msra.mxu0 0.0
    %662 = vmatprep.subr.mxu0 0.0
    %663 = vmatpush2.msra.mxu0 0.0
    %664 = vmatprep.subr.mxu0 0.0
    %665 = vmatpush2.msra.mxu0 0.0
    %666 = vmatprep.mubr.f32.mxu0 0.0
    %667 = vmatmul.mubr.f32.gmra.mxu0 %v579
    %v668 = vpop.f32.mrf.mxu0
    %v669 = vadd.f32 0.0, %v668
    %v670 = vpop.f32.mrf.mxu0
    %671 = vmatprep.mubr.f32.mxu0 0.0
    %672 = vmatmul.mubr.f32.gmra.mxu0 %v582
    %v673 = vpop.f32.mrf.mxu0
    %v674 = vadd.f32 0.0, %v673
    %v675 = vpop.f32.mrf.mxu0
    %676 = vmatprep.mubr.f32.mxu0 0.0
    %677 = vmatmul.mubr.f32.gmra.mxu0 %v585
    %v678 = vpop.f32.mrf.mxu0
    %v679 = vadd.f32 0.0, %v678
    %v680 = vpop.f32.mrf.mxu0
    %681 = vmatprep.mubr.f32.mxu0 0.0
    %682 = vmatmul.mubr.f32.gmra.mxu0 %v588
    %v683 = vpop.f32.mrf.mxu0
    %v684 = vadd.f32 0.0, %v683
    %v685 = vpop.f32.mrf.mxu0
    %686 = vmatprep.mubr.f32.mxu0 0.0
    %687 = vmatmul.mubr.f32.gmra.mxu0 %v591
    %v688 = vpop.f32.mrf.mxu0
    %v689 = vadd.f32 0.0, %v688
    %v690 = vpop.f32.mrf.mxu0
    %691 = vmatprep.mubr.f32.mxu0 0.0
    %692 = vmatmul.mubr.f32.gmra.mxu0 %v594
    %v693 = vpop.f32.mrf.mxu0
    %v694 = vadd.f32 0.0, %v693
    %v695 = vpop.f32.mrf.mxu0
    %696 = vmatprep.mubr.f32.mxu0 0.0
    %697 = vmatmul.mubr.f32.gmra.mxu0 %v597
    %v698 = vpop.f32.mrf.mxu0
    %v699 = vadd.f32 0.0, %v698
    %v700 = vpop.f32.mrf.mxu0
    %701 = vmatprep.mubr.f32.mxu0 0.0
    %702 = vmatmul.mubr.f32.gmra.mxu0 %v600
    %v703 = vpop.f32.mrf.mxu0
    %v704 = vadd.f32 0.0, %v703
    %v705 = vpop.f32.mrf.mxu0
    %706 = vdwg.mxu0
    %v707 = vmul.f32 %v669, %v65
    %v708 = vmul.f32 %v674, %v66
    %v709 = vmul.f32 %v679, %v67
    %v710 = vmul.f32 %v684, %v68
    %v711 = vmul.f32 %v689, %v69
    %v712 = vmul.f32 %v694, %v70
    %v713 = vmul.f32 %v699, %v71
    %v714 = vmul.f32 %v704, %v72
    %v715 = vadd.f32 %v707, %v709
    %v716 = vadd.f32 %v708, %v710
    %v717 = vadd.f32 %v715, %v711
    %v718 = vadd.f32 %v716, %v712
    %v719 = vadd.f32 %v717, %v713
    %v720 = vadd.f32 %v718, %v714
    %v721 = vld [vmem:[%s9] sm:$0xff]
    %v722 = vld [vmem:[%s9 + $0x8] sm:$0xff]
    %v723 = vld [vmem:[%s9 + $0x10] sm:$0xff]
    %v724 = vld [vmem:[%s9 + $0x18] sm:$0xff]
    %v725 = vld [vmem:[%s10] sm:$0x1]
    %v727 = vlaneseq
    %v728 = vshrl.u32 %v727, 7
    %v729 = vsub.s32 0, %v728
    %v730 = vrot.slane %v725, %v729
    %v733 = vsel %vm84, %v719, 0
    %v736 = vsel %vm84, %v720, 0
    %738 = vmatprep.subr.mxu0 0.0
    %739 = vmatpush1.msra.mxu0 0.0
    %740 = vmatprep.subr.mxu0 0.0
    %741 = vmatpush1.msra.mxu0 0.0
    %742 = vmatprep.subr.mxu0 0.0
    %743 = vmatpush1.msra.mxu0 0.0
    %744 = vmatprep.subr.mxu0 0.0
    %745 = vmatpush1.msra.mxu0 0.0
    %746 = vmatprep.subr.mxu0 0.0
    %747 = vmatpush1.msra.mxu0 0.0
    %748 = vmatprep.subr.mxu0 0.0
    %749 = vmatpush1.msra.mxu0 0.0
    %750 = vmatprep.subr.mxu0 0.0
    %751 = vmatpush1.msra.mxu0 0.0
    %752 = vmatprep.subr.mxu0 0.0
    %753 = vmatpush1.msra.mxu0 0.0
    %754 = vmatprep.subr.mxu0 0.0
    %755 = vmatpush1.msra.mxu0 0.0
    %756 = vmatprep.subr.mxu0 0.0
    %757 = vmatpush1.msra.mxu0 0.0
    %758 = vmatprep.subr.mxu0 0.0
    %759 = vmatpush1.msra.mxu0 0.0
    %760 = vmatprep.subr.mxu0 0.0
    %761 = vmatpush1.msra.mxu0 0.0
    %762 = vmatprep.subr.mxu0 0.0
    %763 = vmatpush1.msra.mxu0 %v724
    %764 = vmatprep.subr.mxu0 0.0
    %765 = vmatpush1.msra.mxu0 %v723
    %766 = vmatprep.subr.mxu0 0.0
    %767 = vmatpush1.msra.mxu0 %v722
    %768 = vmatprep.subr.mxu0 0.0
    %769 = vmatpush1.msra.mxu0 %v721
    %770 = vmatprep.subr.mxu0 0.0
    %771 = vmatpush2.msra.mxu0 0.0
    %772 = vmatprep.subr.mxu0 0.0
    %773 = vmatpush2.msra.mxu0 0.0
    %774 = vmatprep.subr.mxu0 0.0
    %775 = vmatpush2.msra.mxu0 0.0
    %776 = vmatprep.subr.mxu0 0.0
    %777 = vmatpush2.msra.mxu0 0.0
    %778 = vmatprep.subr.mxu0 0.0
    %779 = vmatpush2.msra.mxu0 0.0
    %780 = vmatprep.subr.mxu0 0.0
    %781 = vmatpush2.msra.mxu0 0.0
    %782 = vmatprep.subr.mxu0 0.0
    %783 = vmatpush2.msra.mxu0 0.0
    %784 = vmatprep.subr.mxu0 0.0
    %785 = vmatpush2.msra.mxu0 0.0
    %786 = vmatprep.subr.mxu0 0.0
    %787 = vmatpush2.msra.mxu0 0.0
    %788 = vmatprep.subr.mxu0 0.0
    %789 = vmatpush2.msra.mxu0 0.0
    %790 = vmatprep.subr.mxu0 0.0
    %791 = vmatpush2.msra.mxu0 0.0
    %792 = vmatprep.subr.mxu0 0.0
    %793 = vmatpush2.msra.mxu0 0.0
    %794 = vmatprep.subr.mxu0 0.0
    %795 = vmatpush2.msra.mxu0 0.0
    %796 = vmatprep.subr.mxu0 0.0
    %797 = vmatpush2.msra.mxu0 0.0
    %798 = vmatprep.subr.mxu0 0.0
    %799 = vmatpush2.msra.mxu0 0.0
    %800 = vmatprep.subr.mxu0 0.0
    %801 = vmatpush2.msra.mxu0 0.0
    %802 = vmatprep.mubr.f32.mxu0 0.0
    %803 = vmatmul.mubr.f32.gmra.mxu0 %v733
    %v804 = vpop.f32.mrf.mxu0
    %v805 = vadd.f32 %v730, %v804
    %v806 = vpop.f32.mrf.mxu0
    %807 = vmatprep.mubr.f32.mxu0 0.0
    %808 = vmatmul.mubr.f32.gmra.mxu0 %v736
    %v809 = vpop.f32.mrf.mxu0
    %v810 = vadd.f32 %v730, %v809
    %v811 = vpop.f32.mrf.mxu0
    %812 = vdwg.mxu0
    %v813 = vadd.f32 %v63, %v805
    %v814 = vadd.f32 %v64, %v810
    %v815 = vsel %vm84, %v813, 0.0
    %816 = vadd.xlane.f32.xlu0 %v815
    %v817 = vpop.xlane.xlu0 %816
    %v818 = vsel %vm84, %v814, 0.0
    %819 = vadd.xlane.f32.xlu0 %v818
    %v820 = vpop.xlane.xlu0 %819
    %v821 = vrcp.pop 32.0
    %v822 = vmul.f32 %v817, %v821
    %v823 = vmul.f32 %v820, %v821
    %v824 = vsub.f32 %v813, %v822
    %v825 = vsub.f32 %v814, %v823
    %v826 = vmul.f32 %v824, %v824
    %v827 = vmul.f32 %v825, %v825
    %v828 = vsel %vm84, %v826, 0.0
    %829 = vadd.xlane.f32.xlu0 %v828
    %v830 = vpop.xlane.xlu0 %829
    %v831 = vsel %vm84, %v827, 0.0
    %832 = vadd.xlane.f32.xlu0 %v831
    %v833 = vpop.xlane.xlu0 %832
    %v834 = vmul.f32 %v830, %v821
    %v835 = vmul.f32 %v833, %v821
    %v836 = vadd.f32 %v834, 1e-05
    %v837 = vadd.f32 %v835, 1e-05
    %v838 = vrsqrt.pop %v836
    %v839 = vrsqrt.pop %v837
    %v840 = vmul.f32 %v824, %v838
    %v841 = vmul.f32 %v825, %v839
    %v842 = vld [vmem:[%s11] sm:$0x1]
    %v844 = vlaneseq
    %v845 = vshrl.u32 %v844, 7
    %v846 = vsub.s32 0, %v845
    %v847 = vrot.slane %v842, %v846
    %v849 = vmul.f32 %v840, %v847
    %v850 = vmul.f32 %v841, %v847
    %v851 = vld [vmem:[%s12] sm:$0x1]
    %v853 = vlaneseq
    %v854 = vshrl.u32 %v853, 7
    %v855 = vsub.s32 0, %v854
    %v856 = vrot.slane %v851, %v855
    %v858 = vadd.f32 %v849, %v856
    %v859 = vadd.f32 %v850, %v856
    %v860 = vld [vmem:[%s13] sm:$0xff]
    %v861 = vld [vmem:[%s13 + $0x8] sm:$0xff]
    %v862 = vld [vmem:[%s13 + $0x10] sm:$0xff]
    %v863 = vld [vmem:[%s13 + $0x18] sm:$0xff]
    %v864 = vld [vmem:[%s14] sm:$0x1]
    %v866 = vlaneseq
    %v867 = vshrl.u32 %v866, 7
    %v868 = vsub.s32 0, %v867
    %v869 = vrot.slane %v864, %v868
    %v872 = vsel %vm84, %v858, 0
    %v875 = vsel %vm84, %v859, 0
    %877 = vmatprep.subr.mxu0 0.0
    %878 = vmatpush1.msra.mxu0 0.0
    %879 = vmatprep.subr.mxu0 0.0
    %880 = vmatpush1.msra.mxu0 0.0
    %881 = vmatprep.subr.mxu0 0.0
    %882 = vmatpush1.msra.mxu0 0.0
    %883 = vmatprep.subr.mxu0 0.0
    %884 = vmatpush1.msra.mxu0 0.0
    %885 = vmatprep.subr.mxu0 0.0
    %886 = vmatpush1.msra.mxu0 0.0
    %887 = vmatprep.subr.mxu0 0.0
    %888 = vmatpush1.msra.mxu0 0.0
    %889 = vmatprep.subr.mxu0 0.0
    %890 = vmatpush1.msra.mxu0 0.0
    %891 = vmatprep.subr.mxu0 0.0
    %892 = vmatpush1.msra.mxu0 0.0
    %893 = vmatprep.subr.mxu0 0.0
    %894 = vmatpush1.msra.mxu0 0.0
    %895 = vmatprep.subr.mxu0 0.0
    %896 = vmatpush1.msra.mxu0 0.0
    %897 = vmatprep.subr.mxu0 0.0
    %898 = vmatpush1.msra.mxu0 0.0
    %899 = vmatprep.subr.mxu0 0.0
    %900 = vmatpush1.msra.mxu0 0.0
    %901 = vmatprep.subr.mxu0 0.0
    %902 = vmatpush1.msra.mxu0 %v863
    %903 = vmatprep.subr.mxu0 0.0
    %904 = vmatpush1.msra.mxu0 %v862
    %905 = vmatprep.subr.mxu0 0.0
    %906 = vmatpush1.msra.mxu0 %v861
    %907 = vmatprep.subr.mxu0 0.0
    %908 = vmatpush1.msra.mxu0 %v860
    %909 = vmatprep.subr.mxu0 0.0
    %910 = vmatpush2.msra.mxu0 0.0
    %911 = vmatprep.subr.mxu0 0.0
    %912 = vmatpush2.msra.mxu0 0.0
    %913 = vmatprep.subr.mxu0 0.0
    %914 = vmatpush2.msra.mxu0 0.0
    %915 = vmatprep.subr.mxu0 0.0
    %916 = vmatpush2.msra.mxu0 0.0
    %917 = vmatprep.subr.mxu0 0.0
    %918 = vmatpush2.msra.mxu0 0.0
    %919 = vmatprep.subr.mxu0 0.0
    %920 = vmatpush2.msra.mxu0 0.0
    %921 = vmatprep.subr.mxu0 0.0
    %922 = vmatpush2.msra.mxu0 0.0
    %923 = vmatprep.subr.mxu0 0.0
    %924 = vmatpush2.msra.mxu0 0.0
    %925 = vmatprep.subr.mxu0 0.0
    %926 = vmatpush2.msra.mxu0 0.0
    %927 = vmatprep.subr.mxu0 0.0
    %928 = vmatpush2.msra.mxu0 0.0
    %929 = vmatprep.subr.mxu0 0.0
    %930 = vmatpush2.msra.mxu0 0.0
    %931 = vmatprep.subr.mxu0 0.0
    %932 = vmatpush2.msra.mxu0 0.0
    %933 = vmatprep.subr.mxu0 0.0
    %934 = vmatpush2.msra.mxu0 0.0
    %935 = vmatprep.subr.mxu0 0.0
    %936 = vmatpush2.msra.mxu0 0.0
    %937 = vmatprep.subr.mxu0 0.0
    %938 = vmatpush2.msra.mxu0 0.0
    %939 = vmatprep.subr.mxu0 0.0
    %940 = vmatpush2.msra.mxu0 0.0
    %941 = vmatprep.mubr.f32.mxu0 0.0
    %942 = vmatmul.mubr.f32.gmra.mxu0 %v872
    %v943 = vpop.f32.mrf.mxu0
    %v944 = vadd.f32 %v869, %v943
    %v945 = vpop.f32.mrf.mxu0
    %946 = vmatprep.mubr.f32.mxu0 0.0
    %947 = vmatmul.mubr.f32.gmra.mxu0 %v875
    %v948 = vpop.f32.mrf.mxu0
    %v949 = vadd.f32 %v869, %v948
    %v950 = vpop.f32.mrf.mxu0
    %951 = vdwg.mxu0
    %v952 = vmax.f32 %v944, 0.0
    %v953 = vmax.f32 %v949, 0.0
    %v954 = vld [vmem:[%s15] sm:$0xff]
    %v955 = vld [vmem:[%s15 + $0x8] sm:$0xff]
    %v956 = vld [vmem:[%s15 + $0x10] sm:$0xff]
    %v957 = vld [vmem:[%s15 + $0x18] sm:$0xff]
    %v958 = vld [vmem:[%s15 + $0x20] sm:$0xff]
    %v959 = vld [vmem:[%s15 + $0x28] sm:$0xff]
    %v960 = vld [vmem:[%s15 + $0x30] sm:$0xff]
    %v961 = vld [vmem:[%s15 + $0x38] sm:$0xff]
    %v962 = vld [vmem:[%s16] sm:$0x1]
    %v964 = vlaneseq
    %v965 = vshrl.u32 %v964, 7
    %v966 = vsub.s32 0, %v965
    %v967 = vrot.slane %v962, %v966
    %vm969 = vcmask 523264
    %v971 = vsel %vm969, %v952, 0
    %v974 = vsel %vm969, %v953, 0
    %976 = vmatprep.subr.mxu0 0.0
    %977 = vmatpush1.msra.mxu0 0.0
    %978 = vmatprep.subr.mxu0 0.0
    %979 = vmatpush1.msra.mxu0 0.0
    %980 = vmatprep.subr.mxu0 0.0
    %981 = vmatpush1.msra.mxu0 0.0
    %982 = vmatprep.subr.mxu0 0.0
    %983 = vmatpush1.msra.mxu0 0.0
    %984 = vmatprep.subr.mxu0 0.0
    %985 = vmatpush1.msra.mxu0 0.0
    %986 = vmatprep.subr.mxu0 0.0
    %987 = vmatpush1.msra.mxu0 0.0
    %988 = vmatprep.subr.mxu0 0.0
    %989 = vmatpush1.msra.mxu0 0.0
    %990 = vmatprep.subr.mxu0 0.0
    %991 = vmatpush1.msra.mxu0 0.0
    %992 = vmatprep.subr.mxu0 0.0
    %993 = vmatpush1.msra.mxu0 %v961
    %994 = vmatprep.subr.mxu0 0.0
    %995 = vmatpush1.msra.mxu0 %v960
    %996 = vmatprep.subr.mxu0 0.0
    %997 = vmatpush1.msra.mxu0 %v959
    %998 = vmatprep.subr.mxu0 0.0
    %999 = vmatpush1.msra.mxu0 %v958
    %1000 = vmatprep.subr.mxu0 0.0
    %1001 = vmatpush1.msra.mxu0 %v957
    %1002 = vmatprep.subr.mxu0 0.0
    %1003 = vmatpush1.msra.mxu0 %v956
    %1004 = vmatprep.subr.mxu0 0.0
    %1005 = vmatpush1.msra.mxu0 %v955
    %1006 = vmatprep.subr.mxu0 0.0
    %1007 = vmatpush1.msra.mxu0 %v954
    %1008 = vmatprep.subr.mxu0 0.0
    %1009 = vmatpush2.msra.mxu0 0.0
    %1010 = vmatprep.subr.mxu0 0.0
    %1011 = vmatpush2.msra.mxu0 0.0
    %1012 = vmatprep.subr.mxu0 0.0
    %1013 = vmatpush2.msra.mxu0 0.0
    %1014 = vmatprep.subr.mxu0 0.0
    %1015 = vmatpush2.msra.mxu0 0.0
    %1016 = vmatprep.subr.mxu0 0.0
    %1017 = vmatpush2.msra.mxu0 0.0
    %1018 = vmatprep.subr.mxu0 0.0
    %1019 = vmatpush2.msra.mxu0 0.0
    %1020 = vmatprep.subr.mxu0 0.0
    %1021 = vmatpush2.msra.mxu0 0.0
    %1022 = vmatprep.subr.mxu0 0.0
    %1023 = vmatpush2.msra.mxu0 0.0
    %1024 = vmatprep.subr.mxu0 0.0
    %1025 = vmatpush2.msra.mxu0 0.0
    %1026 = vmatprep.subr.mxu0 0.0
    %1027 = vmatpush2.msra.mxu0 0.0
    %1028 = vmatprep.subr.mxu0 0.0
    %1029 = vmatpush2.msra.mxu0 0.0
    %1030 = vmatprep.subr.mxu0 0.0
    %1031 = vmatpush2.msra.mxu0 0.0
    %1032 = vmatprep.subr.mxu0 0.0
    %1033 = vmatpush2.msra.mxu0 0.0
    %1034 = vmatprep.subr.mxu0 0.0
    %1035 = vmatpush2.msra.mxu0 0.0
    %1036 = vmatprep.subr.mxu0 0.0
    %1037 = vmatpush2.msra.mxu0 0.0
    %1038 = vmatprep.subr.mxu0 0.0
    %1039 = vmatpush2.msra.mxu0 0.0
    %1040 = vmatprep.mubr.f32.mxu0 0.0
    %1041 = vmatmul.mubr.f32.gmra.mxu0 %v971
    %v1042 = vpop.f32.mrf.mxu0
    %v1043 = vadd.f32 %v967, %v1042
    %v1044 = vpop.f32.mrf.mxu0
    %1045 = vmatprep.mubr.f32.mxu0 0.0
    %1046 = vmatmul.mubr.f32.gmra.mxu0 %v974
    %v1047 = vpop.f32.mrf.mxu0
    %v1048 = vadd.f32 %v967, %v1047
    %v1049 = vpop.f32.mrf.mxu0
    %1050 = vdwg.mxu0
    %v1051 = vadd.f32 %v858, %v1043
    %v1052 = vadd.f32 %v859, %v1048
    %v1053 = vsel %vm84, %v1051, 0.0
    %1054 = vadd.xlane.f32.xlu0 %v1053
    %v1055 = vpop.xlane.xlu0 %1054
    %v1056 = vsel %vm84, %v1052, 0.0
    %1057 = vadd.xlane.f32.xlu0 %v1056
    %v1058 = vpop.xlane.xlu0 %1057
    %v1059 = vmul.f32 %v1055, %v821
    %v1060 = vmul.f32 %v1058, %v821
    %v1061 = vsub.f32 %v1051, %v1059
    %v1062 = vsub.f32 %v1052, %v1060
    %v1063 = vmul.f32 %v1061, %v1061
    %v1064 = vmul.f32 %v1062, %v1062
    %v1065 = vsel %vm84, %v1063, 0.0
    %1066 = vadd.xlane.f32.xlu0 %v1065
    %v1067 = vpop.xlane.xlu0 %1066
    %v1068 = vsel %vm84, %v1064, 0.0
    %1069 = vadd.xlane.f32.xlu0 %v1068
    %v1070 = vpop.xlane.xlu0 %1069
    %v1071 = vmul.f32 %v1067, %v821
    %v1072 = vmul.f32 %v1070, %v821
    %v1073 = vadd.f32 %v1071, 1e-05
    %v1074 = vadd.f32 %v1072, 1e-05
    %v1075 = vrsqrt.pop %v1073
    %v1076 = vrsqrt.pop %v1074
    %v1077 = vmul.f32 %v1061, %v1075
    %v1078 = vmul.f32 %v1062, %v1076
    %v1079 = vld [vmem:[%s17] sm:$0x1]
    %v1081 = vlaneseq
    %v1082 = vshrl.u32 %v1081, 7
    %v1083 = vsub.s32 0, %v1082
    %v1084 = vrot.slane %v1079, %v1083
    %v1086 = vmul.f32 %v1077, %v1084
    %v1087 = vmul.f32 %v1078, %v1084
    %v1088 = vld [vmem:[%s18] sm:$0x1]
    %v1090 = vlaneseq
    %v1091 = vshrl.u32 %v1090, 7
    %v1092 = vsub.s32 0, %v1091
    %v1093 = vrot.slane %v1088, %v1092
    %v1095 = vadd.f32 %v1086, %v1093
    %v1096 = vadd.f32 %v1087, %v1093
    %1097 = vst.msk [vmem:[#allocation2] sm:$0xff] %vm84, %v1095
    %1098 = vst.msk [vmem:[#allocation2 + $0x8] sm:$0xff] %vm84, %v1096
    // Predicated region
    $region78: #{encoder_layer.1} parent=1 // pred_check
      _
    $region79: #{encoder_layer.1} parent=1 // pred_check_branch
      %1100 = sbr.rel (0) target = $region81
    $region80: #{encoder_layer.1} parent=1 // pred_region
      %s1102 = ssub.s32 256, 256
      %1103 = vsyncadd [#allocation3], %s1102
      %s1104 = sshll.u32 [#allocation2], 4
      %s1105 = int_to_ptr.vmem [resolvable:$true] %s1104
      %1110 = dma.vmem_to_hbm [thread:$0]  %s1105, 256, %s19, [#allocation3], 128, 128, 8
    $region81: #{encoder_layer.1} parent=1 // pred_fallthru
      _
    // Predicated region
    $region82: #{encoder_layer.1} parent=1 // pred_check
      _
    $region83: #{encoder_layer.1} parent=1 // pred_check_branch
      %1112 = sbr.rel (0) target = $region85
    $region84: #{encoder_layer.1} parent=1 // pred_region
      %1113 = dma.done [#allocation3], 256
    $region85: #{encoder_layer.1} parent=1 // pred_fallthru
      _
    %1114 = vsyncpa [#allocation3], 1

</llo_original>
